<compile_context>
chip_gen: v5e
topology: v5e:2x2
jax: 0.10.0
libtpu: 0.0.40
codegen_flags: <defaults>
</compile_context>

<pallas_src>
import math

import jax
import jax.numpy as jnp
from jax.experimental import pallas as pl
from jax.experimental.pallas import tpu as pltpu


def _down_proj_kernel(top_ref, bot_ref, wt_ref, wb_ref, b_ref, o_ref):
    """One tile: two (tr, Wo, 2C) patch halves -> (tr*Wo, Cp) projected patches."""
    tr, wo, kc = top_ref.shape
    m = tr * wo
    # Leading-axis merge only (row-major, no lane movement) + cast to MXU dtype.
    top = top_ref[...].reshape(m, kc).astype(wt_ref.dtype)
    bot = bot_ref[...].reshape(m, kc).astype(wb_ref.dtype)
    acc = jnp.dot(top, wt_ref[...], preferred_element_type=jnp.float32)
    acc = acc + jnp.dot(bot, wb_ref[...], preferred_element_type=jnp.float32)
    o_ref[...] = (acc + b_ref[...]).astype(o_ref.dtype)


def _round_up(x, m):
    return ((x + m - 1) // m) * m


def down_layer_forward(x, w_pt, bias, img_size, dim_in, dim_out, *, mxu_bf16=True):
    """x: (B, N, C_in) with N = img_size**2 (img_size even). Returns (B, N//4, dim_out)."""
    B, N, C = x.shape
    assert N == img_size * img_size and C == dim_in
    assert img_size % 2 == 0, "Conv2d(k=2, s=2) patchify path requires an even img_size."
    H = W = img_size
    Ho, Wo = H // 2, W // 2
    R = B * Ho                    # number of image-row pairs (= patch rows)
    two_c = 2 * C                 # features per kh-half of a patch: (kw, c) order
    M = R * Wo                    # total number of 2x2 patches

    # Free row-major view: (B, H, W, C) == (B*Ho, 2, Wo, 2C).  No data movement.
    x4 = x.reshape(R, 2, Wo, two_c)

    # Conv weight (O, C, 2, 2) -> HWIO (2, 2, C, O) -> two (2C, O) halves whose
    # feature order (kw, c) matches the contiguous last dim of x4.
    w_hwio = jnp.transpose(w_pt, (2, 3, 1, 0))
    wt = w_hwio[0].reshape(two_c, dim_out)   # kh = 0
    wb = w_hwio[1].reshape(two_c, dim_out)   # kh = 1

    # Lane-dense output: pad C_out to a multiple of 128 (zero columns).
    Cp = _round_up(dim_out, 128)
    if Cp != dim_out:
        # TODO(synk): non-multiple-of-128 dim_out pays one extra HBM pass for the
        # wrapper-side column slice; this is a no-op for real Flowformer dims.
        wt = jnp.pad(wt, ((0, 0), (0, Cp - dim_out)))
        wb = jnp.pad(wb, ((0, 0), (0, Cp - dim_out)))
        b2 = jnp.pad(bias, (0, Cp - dim_out)).reshape(1, Cp)
    else:
        b2 = bias.reshape(1, Cp)
    mxu_dtype = jnp.bfloat16 if mxu_bf16 else x.dtype
    wt = wt.astype(mxu_dtype)
    wb = wb.astype(mxu_dtype)
    b2 = b2.astype(jnp.float32)

    # ---- Tile sizing (generation-aware) -------------------------------------
    try:
        vmem_cap = int(pltpu.get_tpu_info().vmem_capacity_bytes)
    except Exception:   # interpret mode / unknown device
        vmem_cap = 64 * 1024 * 1024
    # <=48 MiB scoped on 64 MiB parts (v7x), <=96 MiB on 128 MiB parts (v5e/v6e).
    vmem_limit = min((vmem_cap * 3) // 4, 96 * 1024 * 1024)

    in_b = x.dtype.itemsize
    out_b = x.dtype.itemsize
    w_b = jnp.dtype(mxu_dtype).itemsize
    # Per pair-row VMEM bytes.  The x2 pipeline double-buffering of the
    # activation input/output blocks is ALREADY included here (no extra //2
    # on the budget below), plus the in-kernel operand copies and f32 acc.
    per_tr = (2 * (2 * Wo * two_c * in_b)      # top+bot input blocks, double-buffered
              + 2 * (Wo * Cp * out_b)          # output block, double-buffered
              + 2 * Wo * two_c * w_b           # in-kernel MXU-dtype operand copies
              + Wo * Cp * 4)                   # f32 accumulator
    # Index-constant weights + bias; count 2 buffers in case Buffered(1) is unavailable.
    w_cost = 2 * (2 * two_c * Cp * w_b + Cp * 4)
    headroom = 2 * 1024 * 1024
    budget = max(0, vmem_limit - w_cost - headroom)

    # Target ~2048 output rows/tile on 64 MiB parts (v7x), ~4096 on 128 MiB parts.
    target_rows = 2048 if vmem_cap <= 64 * 1024 * 1024 else 4096

    tr = min(max(1, budget // per_tr), max(1, target_rows // Wo), R)
    # Keep non-final output blocks sublane-aligned: tr*Wo a multiple of 8.
    step = 8 // math.gcd(Wo, 8)
    tr = max(step, (tr // step) * step)
    # Keep >= 8 grid steps (>= 4 pipelined steps per v7x TensorCore; also keeps
    # the DMA prologue/epilogue hidden on single-core v5e/v6e).
    min_steps = 8
    if R >= min_steps * step:
        tr = min(tr, max(step, ((R // min_steps) // step) * step))
    tr = min(tr, R)
    grid = (pl.cdiv(R, tr),)

    def build(const_kwargs):
        def const_spec(shape):
            return pl.BlockSpec(shape, lambda i: (0, 0), **const_kwargs)
        return pl.pallas_call(
            _down_proj_kernel,
            out_shape=jax.ShapeDtypeStruct((M, Cp), x.dtype),
            grid_spec=pltpu.PrefetchScalarGridSpec(
                num_scalar_prefetch=0,
                grid=grid,
                in_specs=[
                    # kh = 0 / kh = 1 halves delivered as two dense block DMAs
                    # (axis 1 squeezed out; no strided slice inside the kernel).
                    pl.BlockSpec((tr, None, Wo, two_c), lambda i: (i, 0, 0, 0)),
                    pl.BlockSpec((tr, None, Wo, two_c), lambda i: (i, 1, 0, 0)),
                    const_spec((two_c, Cp)),
                    const_spec((two_c, Cp)),
                    const_spec((1, Cp)),
                ],
                out_specs=pl.BlockSpec((tr * Wo, Cp), lambda i: (i, 0)),
            ),
            compiler_params=pltpu.CompilerParams(
                dimension_semantics=("parallel",),
                vmem_limit_bytes=int(vmem_limit),
            ),
        )

    try:
        # Index-constant weight/bias blocks: single pipeline buffer (fetched once).
        out = build(dict(pipeline_mode=pl.Buffered(1)))(x4, x4, wt, wb, b2)
    except Exception:
        # Fallback for jax versions without BlockSpec(pipeline_mode=...) support.
        out = build({})(x4, x4, wt, wb, b2)

    if Cp != dim_out:
        out = out[:, :dim_out]
    return out.reshape(B, Ho * Wo, dim_out)


if __name__ == "__main__":
    # Small shapes consistent with the module's forward: x is (B, N, C_in).
    B = 2
    img_size = 16
    dim_in = 4
    dim_out = 8
    N = img_size * img_size

    key = jax.random.PRNGKey(0)
    kx, kw, kb = jax.random.split(key, 3)

    x = jax.random.normal(kx, (B, N, dim_in), dtype=jnp.float32)

    # Deterministic synthetic Conv2d params (PyTorch layout: (O, C_in, 2, 2)).
    fan_in = dim_in * 2 * 2
    bound = 1.0 / math.sqrt(fan_in)
    w_pt = jax.random.uniform(kw, (dim_out, dim_in, 2, 2),
                              minval=-bound, maxval=bound, dtype=jnp.float32)
    bias = jax.random.uniform(kb, (dim_out,),
                              minval=-bound, maxval=bound, dtype=jnp.float32)

    y = down_layer_forward(x, w_pt, bias, img_size, dim_in, dim_out)
    y = jax.block_until_ready(y)

    # Pure-JAX f32 reference of the same conv.  The kernel streams bf16 into
    # the MXU with f32 accumulation, hence the slightly relaxed tolerance.
    x_nhwc = x.reshape(B, img_size, img_size, dim_in)
    ref = jax.lax.conv_general_dilated(
        x_nhwc, jnp.transpose(w_pt, (2, 3, 1, 0)),  # HWIO
        window_strides=(2, 2), padding="VALID",
        dimension_numbers=("NHWC", "HWIO", "NHWC"),
    ) + bias
    ref = ref.reshape(B, N // 4, dim_out)
    assert y.shape == (B, N // 4, dim_out)
    assert jnp.allclose(y, ref, atol=3e-2, rtol=3e-2), float(jnp.max(jnp.abs(y - ref)))

    print("KERNEL_OK")
</pallas_src>

<mosaic_0001>
module attributes {stable_mosaic.version = 11 : i64} {
  func.func @_down_proj_kernel(%arg0: i32, %arg1: memref<2x1x8x8xf32, #tpu.memory_space<vmem>>, %arg2: memref<2x1x8x8xf32, #tpu.memory_space<vmem>>, %arg3: memref<8x128xbf16, #tpu.memory_space<vmem>>, %arg4: memref<8x128xbf16, #tpu.memory_space<vmem>>, %arg5: memref<1x128xf32, #tpu.memory_space<vmem>>, %arg6: memref<16x128xf32, #tpu.memory_space<vmem>>) attributes {dimension_semantics = [#tpu.dimension_semantics<parallel>], iteration_bounds = array<i64: 8>, scalar_prefetch = 0 : i64, scratch_operands = 0 : i64, tpu.core_type = #tpu.core_type<tc>, window_params = [{transform_indices = @transform_0, window_bounds = array<i64: 2, 1, 8, 8>}, {transform_indices = @transform_1, window_bounds = array<i64: 2, 1, 8, 8>}, {pipeline_mode = #tpu.pipeline_mode<synchronous>, transform_indices = @transform_2, window_bounds = array<i64: 8, 128>}, {pipeline_mode = #tpu.pipeline_mode<synchronous>, transform_indices = @transform_3, window_bounds = array<i64: 8, 128>}, {pipeline_mode = #tpu.pipeline_mode<synchronous>, transform_indices = @transform_4, window_bounds = array<i64: 1, 128>}, {transform_indices = @transform_5, window_bounds = array<i64: 16, 128>}]} {
    %c0 = arith.constant 0 : index
    %c0_0 = arith.constant 0 : index
    %c0_1 = arith.constant 0 : index
    %c0_2 = arith.constant 0 : index
    %0 = vector.load %arg1[%c0, %c0_0, %c0_1, %c0_2] : memref<2x1x8x8xf32, #tpu.memory_space<vmem>>, vector<2x1x8x8xf32>
    %1 = vector.shape_cast %0 : vector<2x1x8x8xf32> to vector<2x8x8xf32>
    %2 = vector.shape_cast %1 : vector<2x8x8xf32> to vector<16x8xf32>
    %3 = arith.truncf %2 : vector<16x8xf32> to vector<16x8xbf16>
    %c0_3 = arith.constant 0 : index
    %c0_4 = arith.constant 0 : index
    %c0_5 = arith.constant 0 : index
    %c0_6 = arith.constant 0 : index
    %4 = vector.load %arg2[%c0_3, %c0_4, %c0_5, %c0_6] : memref<2x1x8x8xf32, #tpu.memory_space<vmem>>, vector<2x1x8x8xf32>
    %5 = vector.shape_cast %4 : vector<2x1x8x8xf32> to vector<2x8x8xf32>
    %6 = vector.shape_cast %5 : vector<2x8x8xf32> to vector<16x8xf32>
    %7 = arith.truncf %6 : vector<16x8xf32> to vector<16x8xbf16>
    %c0_7 = arith.constant 0 : index
    %c0_8 = arith.constant 0 : index
    %8 = vector.load %arg3[%c0_7, %c0_8] : memref<8x128xbf16, #tpu.memory_space<vmem>>, vector<8x128xbf16>
    %cst = arith.constant dense<0.000000e+00> : vector<16x128xf32>
    %9 = tpu.matmul %3, %8, %cst {dimension_numbers = #tpu.dot_dimension_numbers<[1], [0], [0], [1], [0, 0, 1, 1], [], []>} : vector<16x8xbf16>, vector<8x128xbf16>, vector<16x128xf32> -> vector<16x128xf32>
    %c0_9 = arith.constant 0 : index
    %c0_10 = arith.constant 0 : index
    %10 = vector.load %arg4[%c0_9, %c0_10] : memref<8x128xbf16, #tpu.memory_space<vmem>>, vector<8x128xbf16>
    %cst_11 = arith.constant dense<0.000000e+00> : vector<16x128xf32>
    %11 = tpu.matmul %7, %10, %cst_11 {dimension_numbers = #tpu.dot_dimension_numbers<[1], [0], [0], [1], [0, 0, 1, 1], [], []>} : vector<16x8xbf16>, vector<8x128xbf16>, vector<16x128xf32> -> vector<16x128xf32>
    %12 = arith.addf %9, %11 : vector<16x128xf32>
    %c0_12 = arith.constant 0 : index
    %c0_13 = arith.constant 0 : index
    %13 = vector.load %arg5[%c0_12, %c0_13] : memref<1x128xf32, #tpu.memory_space<vmem>>, vector<1x128xf32>
    %14 = vector.broadcast %13 : vector<1x128xf32> to vector<16x128xf32>
    %15 = arith.addf %12, %14 : vector<16x128xf32>
    %c0_14 = arith.constant 0 : index
    %c0_15 = arith.constant 0 : index
    %16 = vector.load %arg6[%c0_14, %c0_15] : memref<16x128xf32, #tpu.memory_space<vmem>>, vector<16x128xf32>
    tpu.vector_store %arg6[%c0_14, %c0_15], %15 {strides = array<i32>} : memref<16x128xf32, #tpu.memory_space<vmem>>, vector<16x128xf32>,
    return
  }
  func.func @transform_0(%arg0: i32) -> (i32, i32, i32, i32) {
    %c0_i32 = arith.constant 0 : i32
    %c0_i32_0 = arith.constant 0 : i32
    %c0_i32_1 = arith.constant 0 : i32
    %c0_i32_2 = arith.constant 0 : i32
    return %arg0, %c0_i32, %c0_i32_0, %c0_i32_1 : i32, i32, i32, i32
  }
  func.func @transform_1(%arg0: i32) -> (i32, i32, i32, i32) {
    %c1_i32 = arith.constant 1 : i32
    %c0_i32 = arith.constant 0 : i32
    %c0_i32_0 = arith.constant 0 : i32
    %c0_i32_1 = arith.constant 0 : i32
    return %arg0, %c1_i32, %c0_i32, %c0_i32_0 : i32, i32, i32, i32
  }
  func.func @transform_2(%arg0: i32) -> (i32, i32) {
    %c0_i32 = arith.constant 0 : i32
    %c0_i32_0 = arith.constant 0 : i32
    %c0_i32_1 = arith.constant 0 : i32
    return %c0_i32, %c0_i32_0 : i32, i32
  }
  func.func @transform_3(%arg0: i32) -> (i32, i32) {
    %c0_i32 = arith.constant 0 : i32
    %c0_i32_0 = arith.constant 0 : i32
    %c0_i32_1 = arith.constant 0 : i32
    return %c0_i32, %c0_i32_0 : i32, i32
  }
  func.func @transform_4(%arg0: i32) -> (i32, i32) {
    %c0_i32 = arith.constant 0 : i32
    %c0_i32_0 = arith.constant 0 : i32
    %c0_i32_1 = arith.constant 0 : i32
    return %c0_i32, %c0_i32_0 : i32, i32
  }
  func.func @transform_5(%arg0: i32) -> (i32, i32) {
    %c0_i32 = arith.constant 0 : i32
    %c0_i32_0 = arith.constant 0 : i32
    return %arg0, %c0_i32 : i32, i32
  }
}

module attributes {stable_mosaic.version = 11 : i64} {
  func.func @_down_proj_kernel(%arg0: i32, %arg1: memref<2x1x8x8xf32, #tpu.memory_space<vmem>>, %arg2: memref<2x1x8x8xf32, #tpu.memory_space<vmem>>, %arg3: memref<8x128xbf16, #tpu.memory_space<vmem>>, %arg4: memref<8x128xbf16, #tpu.memory_space<vmem>>, %arg5: memref<1x128xf32, #tpu.memory_space<vmem>>, %arg6: memref<16x128xf32, #tpu.memory_space<vmem>>) attributes {dimension_semantics = [#tpu.dimension_semantics<parallel>], iteration_bounds = array<i64: 8>, scalar_prefetch = 0 : i64, scratch_operands = 0 : i64, tpu.core_type = #tpu.core_type<tc>, window_params = [{transform_indices = @transform_0, window_bounds = array<i64: 2, 1, 8, 8>}, {transform_indices = @transform_1, window_bounds = array<i64: 2, 1, 8, 8>}, {pipeline_mode = #tpu.pipeline_mode<synchronous>, transform_indices = @transform_2, window_bounds = array<i64: 8, 128>}, {pipeline_mode = #tpu.pipeline_mode<synchronous>, transform_indices = @transform_3, window_bounds = array<i64: 8, 128>}, {pipeline_mode = #tpu.pipeline_mode<synchronous>, transform_indices = @transform_4, window_bounds = array<i64: 1, 128>}, {transform_indices = @transform_5, window_bounds = array<i64: 16, 128>}]} {
    %c0 = arith.constant 0 : index
    %c0_0 = arith.constant 0 : index
    %c0_1 = arith.constant 0 : index
    %c0_2 = arith.constant 0 : index
    %0 = vector.load %arg1[%c0, %c0_0, %c0_1, %c0_2] : memref<2x1x8x8xf32, #tpu.memory_space<vmem>>, vector<2x1x8x8xf32>
    %1 = vector.shape_cast %0 : vector<2x1x8x8xf32> to vector<2x8x8xf32>
    %2 = vector.shape_cast %1 : vector<2x8x8xf32> to vector<16x8xf32>
    %3 = arith.truncf %2 : vector<16x8xf32> to vector<16x8xbf16>
    %c0_3 = arith.constant 0 : index
    %c0_4 = arith.constant 0 : index
    %c0_5 = arith.constant 0 : index
    %c0_6 = arith.constant 0 : index
    %4 = vector.load %arg2[%c0_3, %c0_4, %c0_5, %c0_6] : memref<2x1x8x8xf32, #tpu.memory_space<vmem>>, vector<2x1x8x8xf32>
    %5 = vector.shape_cast %4 : vector<2x1x8x8xf32> to vector<2x8x8xf32>
    %6 = vector.shape_cast %5 : vector<2x8x8xf32> to vector<16x8xf32>
    %7 = arith.truncf %6 : vector<16x8xf32> to vector<16x8xbf16>
    %c0_7 = arith.constant 0 : index
    %c0_8 = arith.constant 0 : index
    %8 = vector.load %arg3[%c0_7, %c0_8] : memref<8x128xbf16, #tpu.memory_space<vmem>>, vector<8x128xbf16>
    %cst = arith.constant dense<0.000000e+00> : vector<16x128xf32>
    %9 = tpu.matmul %3, %8, %cst {dimension_numbers = #tpu.dot_dimension_numbers<[1], [0], [0], [1], [0, 0, 1, 1], [], []>} : vector<16x8xbf16>, vector<8x128xbf16>, vector<16x128xf32> -> vector<16x128xf32>
    %c0_9 = arith.constant 0 : index
    %c0_10 = arith.constant 0 : index
    %10 = vector.load %arg4[%c0_9, %c0_10] : memref<8x128xbf16, #tpu.memory_space<vmem>>, vector<8x128xbf16>
    %cst_11 = arith.constant dense<0.000000e+00> : vector<16x128xf32>
    %11 = tpu.matmul %7, %10, %cst_11 {dimension_numbers = #tpu.dot_dimension_numbers<[1], [0], [0], [1], [0, 0, 1, 1], [], []>} : vector<16x8xbf16>, vector<8x128xbf16>, vector<16x128xf32> -> vector<16x128xf32>
    %12 = arith.addf %9, %11 : vector<16x128xf32>
    %c0_12 = arith.constant 0 : index
    %c0_13 = arith.constant 0 : index
    %13 = vector.load %arg5[%c0_12, %c0_13] : memref<1x128xf32, #tpu.memory_space<vmem>>, vector<1x128xf32>
    %14 = vector.broadcast %13 : vector<1x128xf32> to vector<16x128xf32>
    %15 = arith.addf %12, %14 : vector<16x128xf32>
    %c0_14 = arith.constant 0 : index
    %c0_15 = arith.constant 0 : index
    %16 = vector.load %arg6[%c0_14, %c0_15] : memref<16x128xf32, #tpu.memory_space<vmem>>, vector<16x128xf32>
    tpu.vector_store %arg6[%c0_14, %c0_15], %15 {strides = array<i32>} : memref<16x128xf32, #tpu.memory_space<vmem>>, vector<16x128xf32>,
    return
  }
  func.func @transform_0(%arg0: i32) -> (i32, i32, i32, i32) {
    %c0_i32 = arith.constant 0 : i32
    %c0_i32_0 = arith.constant 0 : i32
    %c0_i32_1 = arith.constant 0 : i32
    %c0_i32_2 = arith.constant 0 : i32
    return %arg0, %c0_i32, %c0_i32_0, %c0_i32_1 : i32, i32, i32, i32
  }
  func.func @transform_1(%arg0: i32) -> (i32, i32, i32, i32) {
    %c1_i32 = arith.constant 1 : i32
    %c0_i32 = arith.constant 0 : i32
    %c0_i32_0 = arith.constant 0 : i32
    %c0_i32_1 = arith.constant 0 : i32
    return %arg0, %c1_i32, %c0_i32, %c0_i32_0 : i32, i32, i32, i32
  }
  func.func @transform_2(%arg0: i32) -> (i32, i32) {
    %c0_i32 = arith.constant 0 : i32
    %c0_i32_0 = arith.constant 0 : i32
    %c0_i32_1 = arith.constant 0 : i32
    return %c0_i32, %c0_i32_0 : i32, i32
  }
  func.func @transform_3(%arg0: i32) -> (i32, i32) {
    %c0_i32 = arith.constant 0 : i32
    %c0_i32_0 = arith.constant 0 : i32
    %c0_i32_1 = arith.constant 0 : i32
    return %c0_i32, %c0_i32_0 : i32, i32
  }
  func.func @transform_4(%arg0: i32) -> (i32, i32) {
    %c0_i32 = arith.constant 0 : i32
    %c0_i32_0 = arith.constant 0 : i32
    %c0_i32_1 = arith.constant 0 : i32
    return %c0_i32, %c0_i32_0 : i32, i32
  }
  func.func @transform_5(%arg0: i32) -> (i32, i32) {
    %c0_i32 = arith.constant 0 : i32
    %c0_i32_0 = arith.constant 0 : i32
    return %arg0, %c0_i32 : i32, i32
  }
}

</mosaic_0001>

<llo_original>
// kernel: tpu_custom_call.1
$region0: #{tpu_custom_call.1}
  #allocation0 [shape = 'u32[]', space=smem, size = 0x4, offset = 0x4, fixed_abs, tag = 'smem constant byte address 0x4 - core index']
  #allocation1 [shape = 'u32[72,128]{1,0:T(1,128)}', space=vmem, size = 0x9000, scoped, tag = 'internal scratch']
  %s0 = inlined_call_operand.vmem [shape: f32[16,2,8,8], index: 0, kind: input, shape index: {}]
  %s1 = inlined_call_operand.vmem [shape: f32[16,2,8,8], index: 1, kind: input, shape index: {}]
  %s2 = inlined_call_operand.vmem [shape: bf16[8,128], index: 2, kind: input, shape index: {}]
  %s3 = inlined_call_operand.vmem [shape: bf16[8,128], index: 3, kind: input, shape index: {}]
  %s4 = inlined_call_operand.vmem [shape: f32[1,128], index: 4, kind: input, shape index: {}]
  %s5 = inlined_call_operand.hbm [shape: f32[128,128], index: 5, kind: output, shape index: {}]
  %s6 = sld [smem:[#allocation0]]
  $region129: #{tpu_custom_call.1} parent=0
    _
  %s8 = ssub.s32 1, %s6
  %s9 = scalar_select 0, %s8, %s6
  $region1: #{tpu_custom_call.1} parent=0
    #allocation2 [shape = 'u8[16384]{0}', space=vmem, size = 0x4000, scoped, tag = 'input window, operand 0']
    #allocation3 [shape = 'u8[16384]{0}', space=vmem, size = 0x4000, scoped, tag = 'input window, operand 1']
    #allocation4 [shape = 'u8[16384]{0}', space=vmem, size = 0x4000, scoped, tag = 'output window, operand 0']
    #allocation5 [shape = 's32[2]{0}', space=sflag, size = 0x8, scoped, tag = 'scoped memory for tpu_custom_call.1']
    %10 = vsyncpa [#allocation5], 0
    %s11 = scalar_lea.sflag [#allocation5], 1
    %12 = vsyncpa %s11, 0
    loop: start=0, step=1, limit=10
    $region2: #{tpu_custom_call.1} parent=1 // loop_pre_header
      _
    $region3: #{tpu_custom_call.1} parent=1 // loop_header
      %s14 = sphi 0, %s18
      %p15 = scmp.ge.s32.totalorder %s14, 10
      %s24 = sphi 0, %s26
      %s27 = sphi 0, %s24
      %s28 = sphi 0, %s27
      %s44 = sphi 0, %s28
      %s50 = sphi 0, %s52
      %s53 = sphi 0, %s50
      %s54 = sphi 0, %s53
      %s70 = sphi 0, %s54
      %s74 = sphi 0, %s74
      %s76 = sphi 0, %s74
      %s77 = sphi 0, %s76
      %s91 = sphi 0, %s77
      %s95 = sphi 0, %s95
      %s97 = sphi 0, %s95
      %s98 = sphi 0, %s97
      %s112 = sphi 0, %s98
      %s116 = sphi 0, %s116
      %s118 = sphi 0, %s116
      %s119 = sphi 0, %s118
      %s133 = sphi 0, %s119
      %s139 = sphi 0, %s141
      %s142 = sphi 0, %s139
      %s143 = sphi 0, %s142
      %s159 = sphi 0, %s143
    $region4: #{tpu_custom_call.1} parent=1 // loop_header_branch
      %17 = sbr.rel (%p15) target = $region8
    $region5: #{tpu_custom_call.1} parent=1 // loop_body
      %s19 = ssub.s32 %s14, 1
      %s20 = ssub.s32 %s14, 2
      %s21 = sadd.s32 %s14, 1
      %s22 = ssub.s32 %s14, %s21
      %p23 = scmp.eq.s32.totalorder %s22, 0
      %s25 = sadd.s32 %s24, 1
      %s26 = scalar_select %p23, %s24, %s25
      %p29 = pneg %p23
      %p30 = scmp.eq.s32.totalorder %s14, 7
      %p31 = por %p29, %p30
      %p32 = scmp.ne.s32.totalorder %s24, %s27
      %p33 = scmp.eq.s32.totalorder %s14, 0
      %p34 = por %p32, %p33
      %p35 = scmp.ne.s32.totalorder %s24, %s27
      %p36 = scmp.eq.s32.totalorder %s19, 7
      %p37 = por %p35, %p36
      %p38 = scmp.ne.s32.totalorder %s27, %s28
      %p39 = scmp.eq.s32.totalorder %s19, 0
      %p40 = por %p38, %p39
      %p41 = scmp.ne.s32.totalorder %s27, %s28
      %p42 = scmp.eq.s32.totalorder %s20, 7
      %p43 = por %p41, %p42
      %p45 = scmp.ne.s32.totalorder %s28, %s44
      %p46 = scmp.eq.s32.totalorder %s20, 0
      %p47 = por %p45, %p46
      %s48 = ssub.s32 %s14, %s21
      %p49 = scmp.eq.s32.totalorder %s48, 0
      %s51 = sadd.s32 %s50, 1
      %s52 = scalar_select %p49, %s50, %s51
      %p55 = pneg %p49
      %p56 = scmp.eq.s32.totalorder %s14, 7
      %p57 = por %p55, %p56
      %p58 = scmp.ne.s32.totalorder %s50, %s53
      %p59 = scmp.eq.s32.totalorder %s14, 0
      %p60 = por %p58, %p59
      %p61 = scmp.ne.s32.totalorder %s50, %s53
      %p62 = scmp.eq.s32.totalorder %s19, 7
      %p63 = por %p61, %p62
      %p64 = scmp.ne.s32.totalorder %s53, %s54
      %p65 = scmp.eq.s32.totalorder %s19, 0
      %p66 = por %p64, %p65
      %p67 = scmp.ne.s32.totalorder %s53, %s54
      %p68 = scmp.eq.s32.totalorder %s20, 7
      %p69 = por %p67, %p68
      %p71 = scmp.ne.s32.totalorder %s54, %s70
      %p72 = scmp.eq.s32.totalorder %s20, 0
      %p73 = por %p71, %p72
      %s75 = sadd.s32 %s74, 1
      %p78 = scmp.eq.s32.totalorder %s14, 7
      %p79 = scmp.ne.s32.totalorder %s74, %s76
      %p80 = scmp.eq.s32.totalorder %s14, 0
      %p81 = por %p79, %p80
      %p82 = scmp.ne.s32.totalorder %s74, %s76
      %p83 = scmp.eq.s32.totalorder %s19, 7
      %p84 = por %p82, %p83
      %p85 = scmp.ne.s32.totalorder %s76, %s77
      %p86 = scmp.eq.s32.totalorder %s19, 0
      %p87 = por %p85, %p86
      %p88 = scmp.ne.s32.totalorder %s76, %s77
      %p89 = scmp.eq.s32.totalorder %s20, 7
      %p90 = por %p88, %p89
      %p92 = scmp.ne.s32.totalorder %s77, %s91
      %p93 = scmp.eq.s32.totalorder %s20, 0
      %p94 = por %p92, %p93
      %s96 = sadd.s32 %s95, 1
      %p99 = scmp.eq.s32.totalorder %s14, 7
      %p100 = scmp.ne.s32.totalorder %s95, %s97
      %p101 = scmp.eq.s32.totalorder %s14, 0
      %p102 = por %p100, %p101
      %p103 = scmp.ne.s32.totalorder %s95, %s97
      %p104 = scmp.eq.s32.totalorder %s19, 7
      %p105 = por %p103, %p104
      %p106 = scmp.ne.s32.totalorder %s97, %s98
      %p107 = scmp.eq.s32.totalorder %s19, 0
      %p108 = por %p106, %p107
      %p109 = scmp.ne.s32.totalorder %s97, %s98
      %p110 = scmp.eq.s32.totalorder %s20, 7
      %p111 = por %p109, %p110
      %p113 = scmp.ne.s32.totalorder %s98, %s112
      %p114 = scmp.eq.s32.totalorder %s20, 0
      %p115 = por %p113, %p114
      %s117 = sadd.s32 %s116, 1
      %p120 = scmp.eq.s32.totalorder %s14, 7
      %p121 = scmp.ne.s32.totalorder %s116, %s118
      %p122 = scmp.eq.s32.totalorder %s14, 0
      %p123 = por %p121, %p122
      %p124 = scmp.ne.s32.totalorder %s116, %s118
      %p125 = scmp.eq.s32.totalorder %s19, 7
      %p126 = por %p124, %p125
      %p127 = scmp.ne.s32.totalorder %s118, %s119
      %p128 = scmp.eq.s32.totalorder %s19, 0
      %p129 = por %p127, %p128
      %p130 = scmp.ne.s32.totalorder %s118, %s119
      %p131 = scmp.eq.s32.totalorder %s20, 7
      %p132 = por %p130, %p131
      %p134 = scmp.ne.s32.totalorder %s119, %s133
      %p135 = scmp.eq.s32.totalorder %s20, 0
      %p136 = por %p134, %p135
      %s137 = ssub.s32 %s14, %s21
      %p138 = scmp.eq.s32.totalorder %s137, 0
      %s140 = sadd.s32 %s139, 1
      %s141 = scalar_select %p138, %s139, %s140
      %p144 = pneg %p138
      %p145 = scmp.eq.s32.totalorder %s14, 7
      %p146 = por %p144, %p145
      %p147 = scmp.ne.s32.totalorder %s139, %s142
      %p148 = scmp.eq.s32.totalorder %s14, 0
      %p149 = por %p147, %p148
      %p150 = scmp.ne.s32.totalorder %s139, %s142
      %p151 = scmp.eq.s32.totalorder %s19, 7
      %p152 = por %p150, %p151
      %p153 = scmp.ne.s32.totalorder %s142, %s143
      %p154 = scmp.eq.s32.totalorder %s19, 0
      %p155 = por %p153, %p154
      %p156 = scmp.ne.s32.totalorder %s142, %s143
      %p157 = scmp.eq.s32.totalorder %s20, 7
      %p158 = por %p156, %p157
      %p160 = scmp.ne.s32.totalorder %s143, %s159
      %p161 = scmp.eq.s32.totalorder %s20, 0
      %p162 = por %p160, %p161
      %p163 = scmp.le.s32.totalorder 1, %s14
      %p164 = scmp.lt.s32.totalorder %s14, 9
      %p165 = pnand %p163, %p164
      %p166 = pneg %p165
      // Predicated region
      $region9: #{tpu_custom_call.1} parent=5 // pred_check
        _
      $region10: #{tpu_custom_call.1} parent=5 // pred_check_branch
        %168 = sbr.rel (%p165) target = $region12
      $region11: #{tpu_custom_call.1} parent=5 // pred_region
        %s169 = ssub.s32 %s14, 1
        // Predicated region
        $region13: #{tpu_custom_call.1} parent=11 // pred_check
          %p170 = pneg %p87
        $region14: #{tpu_custom_call.1} parent=11 // pred_check_branch
          %172 = sbr.rel (%p170) target = $region16
        $region15: #{tpu_custom_call.1} parent=11 // pred_region
          _
        $region16: #{tpu_custom_call.1} parent=11 // pred_fallthru
          _
        // Predicated region
        $region17: #{tpu_custom_call.1} parent=11 // pred_check
          %p173 = pneg %p108
        $region18: #{tpu_custom_call.1} parent=11 // pred_check_branch
          %175 = sbr.rel (%p173) target = $region20
        $region19: #{tpu_custom_call.1} parent=11 // pred_region
          _
        $region20: #{tpu_custom_call.1} parent=11 // pred_fallthru
          _
        // Predicated region
        $region21: #{tpu_custom_call.1} parent=11 // pred_check
          %p176 = pneg %p129
        $region22: #{tpu_custom_call.1} parent=11 // pred_check_branch
          %178 = sbr.rel (%p176) target = $region24
        $region23: #{tpu_custom_call.1} parent=11 // pred_region
          _
        $region24: #{tpu_custom_call.1} parent=11 // pred_fallthru
          _
      $region12: #{tpu_custom_call.1} parent=5 // pred_fallthru
        _
      %p179 = scmp.lt.s32.totalorder %s14, 8
      // Predicated region
      $region25: #{tpu_custom_call.1} parent=5 // pred_check
        %p180 = pneg %p179
      $region26: #{tpu_custom_call.1} parent=5 // pred_check_branch
        %182 = sbr.rel (%p180) target = $region28
      $region27: #{tpu_custom_call.1} parent=5 // pred_region
        // Predicated region
        $region29: #{tpu_custom_call.1} parent=27 // pred_check
          %p183 = pneg %p34
        $region30: #{tpu_custom_call.1} parent=27 // pred_check_branch
          %185 = sbr.rel (%p183) target = $region32
        $region31: #{tpu_custom_call.1} parent=27 // pred_region
          %s186 = sand.u32 %s24, 1
          %s187 = sand.u32 %s24, 1
          %s188 = smul.addr %s187, 16
          %s189 = scalar_lea.vmem [#allocation2], %s188
          %s190 = smul.u32 2, %s14
          %s191 = smul.addr %s190, 2
          %s192 = smul.addr %s191, 8
          %s193 = scalar_lea.vmem %s0, %s192
          // Predicated region
          $region33: #{tpu_custom_call.1} parent=31 // pred_check
            _
          $region34: #{tpu_custom_call.1} parent=31 // pred_check_branch
            %195 = sbr.rel (0) target = $region36
          $region35: #{tpu_custom_call.1} parent=31 // pred_region
            // Predicated region
            $region37: #{tpu_custom_call.1} parent=35 // pred_check
              _
            $region38: #{tpu_custom_call.1} parent=35 // pred_check_branch
              %197 = sbr.rel (0) target = $region40
            $region39: #{tpu_custom_call.1} parent=35 // pred_region
              // Predicated region
              $region52: #{tpu_custom_call.1} parent=39 // pred_check
                _
              $region53: #{tpu_custom_call.1} parent=39 // pred_check_branch
                %215 = sbr.rel (0) target = $region55
              $region54: #{tpu_custom_call.1} parent=39 // pred_region
                loop: start=0, step=1, limit=1
                $region56: #{tpu_custom_call.1} parent=54 // loop_pre_header
                  _
                $region57: #{tpu_custom_call.1} parent=54 // loop_header
                  %s217 = sphi 0, %s221
                  %p218 = scmp.ge.s32.totalorder %s217, 1
                  %s222 = sphi %s193, %s193
                  %s223 = sphi %s189, %s189
                $region58: #{tpu_custom_call.1} parent=54 // loop_header_branch
                  %220 = sbr.rel (%p218) target = $region62
                $region59: #{tpu_custom_call.1} parent=54 // loop_body
                  %v224 = vld [vmem:[%s222] sm:$0xff]
                  %225 = vst [vmem:[%s223] sm:$0xff] %v224
                  %v226 = vld [vmem:[%s222 + $0x10] sm:$0xff]
                  %227 = vst [vmem:[%s223 + $0x8] sm:$0xff] %v226
                $region60: #{tpu_custom_call.1} parent=54 // loop_footer
                  %s221 = sadd.s32 1, %s217
                $region61: #{tpu_custom_call.1} parent=54 // loop_footer_branch
                  %216 = sbr.rel target = $region57
                $region62: #{tpu_custom_call.1} parent=54 // loop_exit
                  _
              $region55: #{tpu_custom_call.1} parent=39 // pred_fallthru
                _
              // Predicated region
              $region63: #{tpu_custom_call.1} parent=39 // pred_check
                _
              $region64: #{tpu_custom_call.1} parent=39 // pred_check_branch
                %229 = sbr.rel target = $region66
              $region65: #{tpu_custom_call.1} parent=39 // pred_region
                _
              $region66: #{tpu_custom_call.1} parent=39 // pred_fallthru
                _
            $region40: #{tpu_custom_call.1} parent=35 // pred_fallthru
              _
            // Predicated region
            $region41: #{tpu_custom_call.1} parent=35 // pred_check
              _
            $region42: #{tpu_custom_call.1} parent=35 // pred_check_branch
              %199 = sbr.rel target = $region44
            $region43: #{tpu_custom_call.1} parent=35 // pred_region
              %s201 = ssub.s32 256, 1
              loop: start=0, step=1, limit=1
              $region45: #{tpu_custom_call.1} parent=43 // loop_pre_header
                _
              $region46: #{tpu_custom_call.1} parent=43 // loop_header
                %s203 = sphi 0, %s207
                %p204 = scmp.ge.s32.totalorder %s203, 1
                %s208 = sphi %s193, %s193
                %s209 = sphi %s189, %s189
              $region47: #{tpu_custom_call.1} parent=43 // loop_header_branch
                %206 = sbr.rel (%p204) target = $region51
              $region48: #{tpu_custom_call.1} parent=43 // loop_body
                %v210 = vld [vmem:[%s208] sm:%s201]
                %211 = vst [vmem:[%s209] sm:%s201] %v210
                %v212 = vld [vmem:[%s208 + $0x10] sm:%s201]
                %213 = vst [vmem:[%s209 + $0x8] sm:%s201] %v212
              $region49: #{tpu_custom_call.1} parent=43 // loop_footer
                %s207 = sadd.s32 1, %s203
              $region50: #{tpu_custom_call.1} parent=43 // loop_footer_branch
                %202 = sbr.rel target = $region46
              $region51: #{tpu_custom_call.1} parent=43 // loop_exit
                _
            $region44: #{tpu_custom_call.1} parent=35 // pred_fallthru
              _
          $region36: #{tpu_custom_call.1} parent=31 // pred_fallthru
            _
          %230 = vnop
        $region32: #{tpu_custom_call.1} parent=27 // pred_fallthru
          _
        // Predicated region
        $region67: #{tpu_custom_call.1} parent=27 // pred_check
          %p231 = pneg %p60
        $region68: #{tpu_custom_call.1} parent=27 // pred_check_branch
          %233 = sbr.rel (%p231) target = $region70
        $region69: #{tpu_custom_call.1} parent=27 // pred_region
          %s234 = sand.u32 %s50, 1
          %s235 = sand.u32 %s50, 1
          %s236 = smul.addr %s235, 16
          %s237 = scalar_lea.vmem [#allocation3], %s236
          %s238 = smul.u32 2, %s14
          %s239 = smul.addr %s238, 2
          %s240 = sadd.s32 1, %s239
          %s241 = smul.addr %s240, 8
          %s242 = scalar_lea.vmem %s1, %s241
          // Predicated region
          $region71: #{tpu_custom_call.1} parent=69 // pred_check
            _
          $region72: #{tpu_custom_call.1} parent=69 // pred_check_branch
            %244 = sbr.rel (0) target = $region74
          $region73: #{tpu_custom_call.1} parent=69 // pred_region
            // Predicated region
            $region75: #{tpu_custom_call.1} parent=73 // pred_check
              _
            $region76: #{tpu_custom_call.1} parent=73 // pred_check_branch
              %246 = sbr.rel (0) target = $region78
            $region77: #{tpu_custom_call.1} parent=73 // pred_region
              // Predicated region
              $region90: #{tpu_custom_call.1} parent=77 // pred_check
                _
              $region91: #{tpu_custom_call.1} parent=77 // pred_check_branch
                %264 = sbr.rel (0) target = $region93
              $region92: #{tpu_custom_call.1} parent=77 // pred_region
                loop: start=0, step=1, limit=1
                $region94: #{tpu_custom_call.1} parent=92 // loop_pre_header
                  _
                $region95: #{tpu_custom_call.1} parent=92 // loop_header
                  %s266 = sphi 0, %s270
                  %p267 = scmp.ge.s32.totalorder %s266, 1
                  %s271 = sphi %s242, %s242
                  %s272 = sphi %s237, %s237
                $region96: #{tpu_custom_call.1} parent=92 // loop_header_branch
                  %269 = sbr.rel (%p267) target = $region100
                $region97: #{tpu_custom_call.1} parent=92 // loop_body
                  %v273 = vld [vmem:[%s271] sm:$0xff]
                  %274 = vst [vmem:[%s272] sm:$0xff] %v273
                  %v275 = vld [vmem:[%s271 + $0x10] sm:$0xff]
                  %276 = vst [vmem:[%s272 + $0x8] sm:$0xff] %v275
                $region98: #{tpu_custom_call.1} parent=92 // loop_footer
                  %s270 = sadd.s32 1, %s266
                $region99: #{tpu_custom_call.1} parent=92 // loop_footer_branch
                  %265 = sbr.rel target = $region95
                $region100: #{tpu_custom_call.1} parent=92 // loop_exit
                  _
              $region93: #{tpu_custom_call.1} parent=77 // pred_fallthru
                _
              // Predicated region
              $region101: #{tpu_custom_call.1} parent=77 // pred_check
                _
              $region102: #{tpu_custom_call.1} parent=77 // pred_check_branch
                %278 = sbr.rel target = $region104
              $region103: #{tpu_custom_call.1} parent=77 // pred_region
                _
              $region104: #{tpu_custom_call.1} parent=77 // pred_fallthru
                _
            $region78: #{tpu_custom_call.1} parent=73 // pred_fallthru
              _
            // Predicated region
            $region79: #{tpu_custom_call.1} parent=73 // pred_check
              _
            $region80: #{tpu_custom_call.1} parent=73 // pred_check_branch
              %248 = sbr.rel target = $region82
            $region81: #{tpu_custom_call.1} parent=73 // pred_region
              %s250 = ssub.s32 256, 1
              loop: start=0, step=1, limit=1
              $region83: #{tpu_custom_call.1} parent=81 // loop_pre_header
                _
              $region84: #{tpu_custom_call.1} parent=81 // loop_header
                %s252 = sphi 0, %s256
                %p253 = scmp.ge.s32.totalorder %s252, 1
                %s257 = sphi %s242, %s242
                %s258 = sphi %s237, %s237
              $region85: #{tpu_custom_call.1} parent=81 // loop_header_branch
                %255 = sbr.rel (%p253) target = $region89
              $region86: #{tpu_custom_call.1} parent=81 // loop_body
                %v259 = vld [vmem:[%s257] sm:%s250]
                %260 = vst [vmem:[%s258] sm:%s250] %v259
                %v261 = vld [vmem:[%s257 + $0x10] sm:%s250]
                %262 = vst [vmem:[%s258 + $0x8] sm:%s250] %v261
              $region87: #{tpu_custom_call.1} parent=81 // loop_footer
                %s256 = sadd.s32 1, %s252
              $region88: #{tpu_custom_call.1} parent=81 // loop_footer_branch
                %251 = sbr.rel target = $region84
              $region89: #{tpu_custom_call.1} parent=81 // loop_exit
                _
            $region82: #{tpu_custom_call.1} parent=73 // pred_fallthru
              _
          $region74: #{tpu_custom_call.1} parent=69 // pred_fallthru
            _
          %279 = vnop
        $region70: #{tpu_custom_call.1} parent=27 // pred_fallthru
          _
      $region28: #{tpu_custom_call.1} parent=5 // pred_fallthru
        _
      %p280 = scmp.le.s32.totalorder 1, %s14
      %p281 = scmp.lt.s32.totalorder %s14, 9
      %p282 = pnand %p280, %p281
      %p283 = pneg %p282
      // Predicated region
      $region105: #{tpu_custom_call.1} parent=5 // pred_check
        _
      $region106: #{tpu_custom_call.1} parent=5 // pred_check_branch
        %285 = sbr.rel (%p282) target = $region108
      $region107: #{tpu_custom_call.1} parent=5 // pred_region
        %s286 = ssub.s32 %s14, 1
        %s287 = sand.u32 %s27, 1
        %s288 = sand.u32 %s27, 1
        %s289 = smul.addr %s288, 16
        %s290 = scalar_lea.vmem [#allocation2], %s289
        // Predicated region
        $region109: #{tpu_custom_call.1} parent=107 // pred_check
          %p291 = pneg %p40
        $region110: #{tpu_custom_call.1} parent=107 // pred_check_branch
          %293 = sbr.rel (%p291) target = $region112
        $region111: #{tpu_custom_call.1} parent=107 // pred_region
          _
        $region112: #{tpu_custom_call.1} parent=107 // pred_fallthru
          _
        %s294 = sand.u32 %s53, 1
        %s295 = sand.u32 %s53, 1
        %s296 = smul.addr %s295, 16
        %s297 = scalar_lea.vmem [#allocation3], %s296
        // Predicated region
        $region113: #{tpu_custom_call.1} parent=107 // pred_check
          %p298 = pneg %p66
        $region114: #{tpu_custom_call.1} parent=107 // pred_check_branch
          %300 = sbr.rel (%p298) target = $region116
        $region115: #{tpu_custom_call.1} parent=107 // pred_region
          _
        $region116: #{tpu_custom_call.1} parent=107 // pred_fallthru
          _
        %s301 = sand.u32 %s27, 1
        %s302 = sand.u32 %s27, 1
        %s303 = smul.addr %s302, 16
        %s304 = scalar_lea.vmem [#allocation2], %s303
        %p305 = pneg %p40
        %p306 = pneg %p37
        %s307 = sand.u32 %s53, 1
        %s308 = sand.u32 %s53, 1
        %s309 = smul.addr %s308, 16
        %s310 = scalar_lea.vmem [#allocation3], %s309
        %p311 = pneg %p66
        %p312 = pneg %p63
        %p313 = pneg %p87
        %p314 = pneg %p84
        %p315 = pneg %p108
        %p316 = pneg %p105
        %p317 = pneg %p129
        %p318 = pneg %p126
        %p319 = pneg %p155
        %p320 = pneg %p152
        %s321 = sand.u32 %s142, 1
        %s322 = scalar_lea.sflag [#allocation5], %s321
        %s323 = sand.u32 %s142, 1
        %s324 = smul.addr %s323, 16
        %s325 = scalar_lea.vmem [#allocation4], %s324
        %s326 = smul.u32 2, %s19
        %s327 = smul.u32 2, %s19
        %s328 = smul.u32 2, %s19
        %v330 = vld [vmem:[%s290] sm:$0xff]
        %v331 = vld [vmem:[%s290 + $0x8] sm:$0xff]
        %v332 = vpack.c.bf16 %v331, %v330
        %v333 = vld [vmem:[%s297] sm:$0xff]
        %v334 = vld [vmem:[%s297 + $0x8] sm:$0xff]
        %v335 = vpack.c.bf16 %v334, %v333
        %v336 = vld [vmem:[%s2] sm:$0xf]
        %v337 = vld [vmem:[%s3] sm:$0xf]
        %vm338 = vcmask 64512
        %v340 = vsel %vm338, %v335, 0
        %vm342 = vcmask 1043456
        %v344 = vsel %vm342, %v337, 0
        %346 = vmatpush.bf16.msra.mxu0 0
        %347 = vmatpush.bf16.msra.mxu0 0
        %348 = vmatpush.bf16.msra.mxu0 0
        %349 = vmatpush.bf16.msra.mxu0 0
        %350 = vmatpush.bf16.msra.mxu0 0
        %351 = vmatpush.bf16.msra.mxu0 0
        %352 = vmatpush.bf16.msra.mxu0 0
        %353 = vmatpush.bf16.msra.mxu0 %v344
        %354 = vmatmul.bf16.gmra.mxu0 %v340
        %v355 = vpop.f32.mrf.mxu0
        %v356 = vadd.f32 0.0, %v355
        %v357 = vpop.f32.mrf.mxu0
        %v358 = vadd.f32 0.0, %v357
        %359 = vdwg.mxu0
        %v361 = vsel %vm338, %v332, 0
        %v364 = vsel %vm342, %v336, 0
        %366 = vmatpush.bf16.msra.mxu0 0
        %367 = vmatpush.bf16.msra.mxu0 0
        %368 = vmatpush.bf16.msra.mxu0 0
        %369 = vmatpush.bf16.msra.mxu0 0
        %370 = vmatpush.bf16.msra.mxu0 0
        %371 = vmatpush.bf16.msra.mxu0 0
        %372 = vmatpush.bf16.msra.mxu0 0
        %373 = vmatpush.bf16.msra.mxu0 %v364
        %374 = vmatmul.bf16.gmra.mxu0 %v361
        %v375 = vpop.f32.mrf.mxu0
        %v376 = vadd.f32 %v356, %v375
        %v377 = vpop.f32.mrf.mxu0
        %v378 = vadd.f32 %v358, %v377
        %379 = vdwg.mxu0
        %v380 = vld [vmem:[%s4] sm:$0x1]
        %v382 = vperm.slane %v380, 0
        %v384 = vadd.f32 %v376, %v382
        %v385 = vadd.f32 %v378, %v382
        %386 = vst [vmem:[%s325] sm:$0xff] %v384
        %387 = vst [vmem:[%s325 + $0x8] sm:$0xff] %v385
        %s388 = sand.u32 %s142, 1
        %s389 = scalar_lea.sflag [#allocation5], %s388
        %s390 = sand.u32 %s142, 1
        %s391 = smul.addr %s390, 16
        %s392 = scalar_lea.vmem [#allocation4], %s391
        // Predicated region
        $region117: #{tpu_custom_call.1} parent=107 // pred_check
          %p393 = pneg %p152
        $region118: #{tpu_custom_call.1} parent=107 // pred_check_branch
          %395 = sbr.rel (%p393) target = $region120
        $region119: #{tpu_custom_call.1} parent=107 // pred_region
          %s396 = smul.u32 2, %s19
          %398 = vsyncadd %s389, 0
          %s399 = smul.addr %s396, 8
          %s400 = scalar_lea.hbm %s5, %s399
          %s401 = sshll.u32 %s392, 4
          %s402 = int_to_ptr.vmem [resolvable:$true] %s401
          %s403 = sshll.u32 %s400, 4
          %s404 = int_to_ptr.hbm [resolvable:$true] %s403
          %409 = dma.vmem_to_hbm [thread:$0]  %s402, 256, %s404, %s389, 128, 128, 8
        $region120: #{tpu_custom_call.1} parent=107 // pred_fallthru
          _
      $region108: #{tpu_custom_call.1} parent=5 // pred_fallthru
        _
      %p410 = scmp.le.s32.totalorder 2, %s14
      // Predicated region
      $region121: #{tpu_custom_call.1} parent=5 // pred_check
        %p411 = pneg %p410
      $region122: #{tpu_custom_call.1} parent=5 // pred_check_branch
        %413 = sbr.rel (%p411) target = $region124
      $region123: #{tpu_custom_call.1} parent=5 // pred_region
        %s414 = ssub.s32 %s14, 2
        // Predicated region
        $region125: #{tpu_custom_call.1} parent=123 // pred_check
          %p415 = pneg %p158
        $region126: #{tpu_custom_call.1} parent=123 // pred_check_branch
          %417 = sbr.rel (%p415) target = $region128
        $region127: #{tpu_custom_call.1} parent=123 // pred_region
          %s418 = sand.u32 %s143, 1
          %s419 = scalar_lea.sflag [#allocation5], %s418
          %s420 = sand.u32 %s143, 1
          %s421 = smul.addr %s420, 16
          %s422 = scalar_lea.vmem [#allocation4], %s421
          %424 = dma.done %s419, 256
        $region128: #{tpu_custom_call.1} parent=123 // pred_fallthru
          _
      $region124: #{tpu_custom_call.1} parent=5 // pred_fallthru
        _
    $region6: #{tpu_custom_call.1} parent=1 // loop_footer
      %s18 = sadd.s32 1, %s14
    $region7: #{tpu_custom_call.1} parent=1 // loop_footer_branch
      %13 = sbr.rel target = $region3
    $region8: #{tpu_custom_call.1} parent=1 // loop_exit
      _
    %425 = vsyncpa [#allocation5], 1
    %s426 = scalar_lea.sflag [#allocation5], 1
    %427 = vsyncpa %s426, 1

// kernel: tpu_custom_call.1
$region0: #{tpu_custom_call.1}
  #allocation0 [shape = 'u32[]', space=smem, size = 0x4, offset = 0x4, fixed_abs, tag = 'smem constant byte address 0x4 - core index']
  #allocation1 [shape = 'u32[72,128]{1,0:T(1,128)}', space=vmem, size = 0x9000, scoped, tag = 'internal scratch']
  %s0 = inlined_call_operand.vmem [shape: f32[16,2,8,8], index: 0, kind: input, shape index: {}]
  %s1 = inlined_call_operand.vmem [shape: f32[16,2,8,8], index: 1, kind: input, shape index: {}]
  %s2 = inlined_call_operand.vmem [shape: bf16[8,128], index: 2, kind: input, shape index: {}]
  %s3 = inlined_call_operand.vmem [shape: bf16[8,128], index: 3, kind: input, shape index: {}]
  %s4 = inlined_call_operand.vmem [shape: f32[1,128], index: 4, kind: input, shape index: {}]
  %s5 = inlined_call_operand.hbm [shape: f32[128,128], index: 5, kind: output, shape index: {}]
  %s6 = sld [smem:[#allocation0]]
  $region129: #{tpu_custom_call.1} parent=0
    _
  %s8 = ssub.s32 1, %s6
  %s9 = scalar_select 0, %s8, %s6
  $region1: #{tpu_custom_call.1} parent=0
    #allocation2 [shape = 'u8[16384]{0}', space=vmem, size = 0x4000, scoped, tag = 'input window, operand 0']
    #allocation3 [shape = 'u8[16384]{0}', space=vmem, size = 0x4000, scoped, tag = 'input window, operand 1']
    #allocation4 [shape = 'u8[16384]{0}', space=vmem, size = 0x4000, scoped, tag = 'output window, operand 0']
    #allocation5 [shape = 's32[2]{0}', space=sflag, size = 0x8, scoped, tag = 'scoped memory for tpu_custom_call.1']
    %10 = vsyncpa [#allocation5], 0
    %s11 = scalar_lea.sflag [#allocation5], 1
    %12 = vsyncpa %s11, 0
    loop: start=0, step=1, limit=10
    $region2: #{tpu_custom_call.1} parent=1 // loop_pre_header
      _
    $region3: #{tpu_custom_call.1} parent=1 // loop_header
      %s14 = sphi 0, %s18
      %p15 = scmp.ge.s32.totalorder %s14, 10
      %s24 = sphi 0, %s26
      %s27 = sphi 0, %s24
      %s28 = sphi 0, %s27
      %s44 = sphi 0, %s28
      %s50 = sphi 0, %s52
      %s53 = sphi 0, %s50
      %s54 = sphi 0, %s53
      %s70 = sphi 0, %s54
      %s74 = sphi 0, %s74
      %s76 = sphi 0, %s74
      %s77 = sphi 0, %s76
      %s91 = sphi 0, %s77
      %s95 = sphi 0, %s95
      %s97 = sphi 0, %s95
      %s98 = sphi 0, %s97
      %s112 = sphi 0, %s98
      %s116 = sphi 0, %s116
      %s118 = sphi 0, %s116
      %s119 = sphi 0, %s118
      %s133 = sphi 0, %s119
      %s139 = sphi 0, %s141
      %s142 = sphi 0, %s139
      %s143 = sphi 0, %s142
      %s159 = sphi 0, %s143
    $region4: #{tpu_custom_call.1} parent=1 // loop_header_branch
      %17 = sbr.rel (%p15) target = $region8
    $region5: #{tpu_custom_call.1} parent=1 // loop_body
      %s19 = ssub.s32 %s14, 1
      %s20 = ssub.s32 %s14, 2
      %s21 = sadd.s32 %s14, 1
      %s22 = ssub.s32 %s14, %s21
      %p23 = scmp.eq.s32.totalorder %s22, 0
      %s25 = sadd.s32 %s24, 1
      %s26 = scalar_select %p23, %s24, %s25
      %p29 = pneg %p23
      %p30 = scmp.eq.s32.totalorder %s14, 7
      %p31 = por %p29, %p30
      %p32 = scmp.ne.s32.totalorder %s24, %s27
      %p33 = scmp.eq.s32.totalorder %s14, 0
      %p34 = por %p32, %p33
      %p35 = scmp.ne.s32.totalorder %s24, %s27
      %p36 = scmp.eq.s32.totalorder %s19, 7
      %p37 = por %p35, %p36
      %p38 = scmp.ne.s32.totalorder %s27, %s28
      %p39 = scmp.eq.s32.totalorder %s19, 0
      %p40 = por %p38, %p39
      %p41 = scmp.ne.s32.totalorder %s27, %s28
      %p42 = scmp.eq.s32.totalorder %s20, 7
      %p43 = por %p41, %p42
      %p45 = scmp.ne.s32.totalorder %s28, %s44
      %p46 = scmp.eq.s32.totalorder %s20, 0
      %p47 = por %p45, %p46
      %s48 = ssub.s32 %s14, %s21
      %p49 = scmp.eq.s32.totalorder %s48, 0
      %s51 = sadd.s32 %s50, 1
      %s52 = scalar_select %p49, %s50, %s51
      %p55 = pneg %p49
      %p56 = scmp.eq.s32.totalorder %s14, 7
      %p57 = por %p55, %p56
      %p58 = scmp.ne.s32.totalorder %s50, %s53
      %p59 = scmp.eq.s32.totalorder %s14, 0
      %p60 = por %p58, %p59
      %p61 = scmp.ne.s32.totalorder %s50, %s53
      %p62 = scmp.eq.s32.totalorder %s19, 7
      %p63 = por %p61, %p62
      %p64 = scmp.ne.s32.totalorder %s53, %s54
      %p65 = scmp.eq.s32.totalorder %s19, 0
      %p66 = por %p64, %p65
      %p67 = scmp.ne.s32.totalorder %s53, %s54
      %p68 = scmp.eq.s32.totalorder %s20, 7
      %p69 = por %p67, %p68
      %p71 = scmp.ne.s32.totalorder %s54, %s70
      %p72 = scmp.eq.s32.totalorder %s20, 0
      %p73 = por %p71, %p72
      %s75 = sadd.s32 %s74, 1
      %p78 = scmp.eq.s32.totalorder %s14, 7
      %p79 = scmp.ne.s32.totalorder %s74, %s76
      %p80 = scmp.eq.s32.totalorder %s14, 0
      %p81 = por %p79, %p80
      %p82 = scmp.ne.s32.totalorder %s74, %s76
      %p83 = scmp.eq.s32.totalorder %s19, 7
      %p84 = por %p82, %p83
      %p85 = scmp.ne.s32.totalorder %s76, %s77
      %p86 = scmp.eq.s32.totalorder %s19, 0
      %p87 = por %p85, %p86
      %p88 = scmp.ne.s32.totalorder %s76, %s77
      %p89 = scmp.eq.s32.totalorder %s20, 7
      %p90 = por %p88, %p89
      %p92 = scmp.ne.s32.totalorder %s77, %s91
      %p93 = scmp.eq.s32.totalorder %s20, 0
      %p94 = por %p92, %p93
      %s96 = sadd.s32 %s95, 1
      %p99 = scmp.eq.s32.totalorder %s14, 7
      %p100 = scmp.ne.s32.totalorder %s95, %s97
      %p101 = scmp.eq.s32.totalorder %s14, 0
      %p102 = por %p100, %p101
      %p103 = scmp.ne.s32.totalorder %s95, %s97
      %p104 = scmp.eq.s32.totalorder %s19, 7
      %p105 = por %p103, %p104
      %p106 = scmp.ne.s32.totalorder %s97, %s98
      %p107 = scmp.eq.s32.totalorder %s19, 0
      %p108 = por %p106, %p107
      %p109 = scmp.ne.s32.totalorder %s97, %s98
      %p110 = scmp.eq.s32.totalorder %s20, 7
      %p111 = por %p109, %p110
      %p113 = scmp.ne.s32.totalorder %s98, %s112
      %p114 = scmp.eq.s32.totalorder %s20, 0
      %p115 = por %p113, %p114
      %s117 = sadd.s32 %s116, 1
      %p120 = scmp.eq.s32.totalorder %s14, 7
      %p121 = scmp.ne.s32.totalorder %s116, %s118
      %p122 = scmp.eq.s32.totalorder %s14, 0
      %p123 = por %p121, %p122
      %p124 = scmp.ne.s32.totalorder %s116, %s118
      %p125 = scmp.eq.s32.totalorder %s19, 7
      %p126 = por %p124, %p125
      %p127 = scmp.ne.s32.totalorder %s118, %s119
      %p128 = scmp.eq.s32.totalorder %s19, 0
      %p129 = por %p127, %p128
      %p130 = scmp.ne.s32.totalorder %s118, %s119
      %p131 = scmp.eq.s32.totalorder %s20, 7
      %p132 = por %p130, %p131
      %p134 = scmp.ne.s32.totalorder %s119, %s133
      %p135 = scmp.eq.s32.totalorder %s20, 0
      %p136 = por %p134, %p135
      %s137 = ssub.s32 %s14, %s21
      %p138 = scmp.eq.s32.totalorder %s137, 0
      %s140 = sadd.s32 %s139, 1
      %s141 = scalar_select %p138, %s139, %s140
      %p144 = pneg %p138
      %p145 = scmp.eq.s32.totalorder %s14, 7
      %p146 = por %p144, %p145
      %p147 = scmp.ne.s32.totalorder %s139, %s142
      %p148 = scmp.eq.s32.totalorder %s14, 0
      %p149 = por %p147, %p148
      %p150 = scmp.ne.s32.totalorder %s139, %s142
      %p151 = scmp.eq.s32.totalorder %s19, 7
      %p152 = por %p150, %p151
      %p153 = scmp.ne.s32.totalorder %s142, %s143
      %p154 = scmp.eq.s32.totalorder %s19, 0
      %p155 = por %p153, %p154
      %p156 = scmp.ne.s32.totalorder %s142, %s143
      %p157 = scmp.eq.s32.totalorder %s20, 7
      %p158 = por %p156, %p157
      %p160 = scmp.ne.s32.totalorder %s143, %s159
      %p161 = scmp.eq.s32.totalorder %s20, 0
      %p162 = por %p160, %p161
      %p163 = scmp.le.s32.totalorder 1, %s14
      %p164 = scmp.lt.s32.totalorder %s14, 9
      %p165 = pnand %p163, %p164
      %p166 = pneg %p165
      // Predicated region
      $region9: #{tpu_custom_call.1} parent=5 // pred_check
        _
      $region10: #{tpu_custom_call.1} parent=5 // pred_check_branch
        %168 = sbr.rel (%p165) target = $region12
      $region11: #{tpu_custom_call.1} parent=5 // pred_region
        %s169 = ssub.s32 %s14, 1
        // Predicated region
        $region13: #{tpu_custom_call.1} parent=11 // pred_check
          %p170 = pneg %p87
        $region14: #{tpu_custom_call.1} parent=11 // pred_check_branch
          %172 = sbr.rel (%p170) target = $region16
        $region15: #{tpu_custom_call.1} parent=11 // pred_region
          _
        $region16: #{tpu_custom_call.1} parent=11 // pred_fallthru
          _
        // Predicated region
        $region17: #{tpu_custom_call.1} parent=11 // pred_check
          %p173 = pneg %p108
        $region18: #{tpu_custom_call.1} parent=11 // pred_check_branch
          %175 = sbr.rel (%p173) target = $region20
        $region19: #{tpu_custom_call.1} parent=11 // pred_region
          _
        $region20: #{tpu_custom_call.1} parent=11 // pred_fallthru
          _
        // Predicated region
        $region21: #{tpu_custom_call.1} parent=11 // pred_check
          %p176 = pneg %p129
        $region22: #{tpu_custom_call.1} parent=11 // pred_check_branch
          %178 = sbr.rel (%p176) target = $region24
        $region23: #{tpu_custom_call.1} parent=11 // pred_region
          _
        $region24: #{tpu_custom_call.1} parent=11 // pred_fallthru
          _
      $region12: #{tpu_custom_call.1} parent=5 // pred_fallthru
        _
      %p179 = scmp.lt.s32.totalorder %s14, 8
      // Predicated region
      $region25: #{tpu_custom_call.1} parent=5 // pred_check
        %p180 = pneg %p179
      $region26: #{tpu_custom_call.1} parent=5 // pred_check_branch
        %182 = sbr.rel (%p180) target = $region28
      $region27: #{tpu_custom_call.1} parent=5 // pred_region
        // Predicated region
        $region29: #{tpu_custom_call.1} parent=27 // pred_check
          %p183 = pneg %p34
        $region30: #{tpu_custom_call.1} parent=27 // pred_check_branch
          %185 = sbr.rel (%p183) target = $region32
        $region31: #{tpu_custom_call.1} parent=27 // pred_region
          %s186 = sand.u32 %s24, 1
          %s187 = sand.u32 %s24, 1
          %s188 = smul.addr %s187, 16
          %s189 = scalar_lea.vmem [#allocation2], %s188
          %s190 = smul.u32 2, %s14
          %s191 = smul.addr %s190, 2
          %s192 = smul.addr %s191, 8
          %s193 = scalar_lea.vmem %s0, %s192
          // Predicated region
          $region33: #{tpu_custom_call.1} parent=31 // pred_check
            _
          $region34: #{tpu_custom_call.1} parent=31 // pred_check_branch
            %195 = sbr.rel (0) target = $region36
          $region35: #{tpu_custom_call.1} parent=31 // pred_region
            // Predicated region
            $region37: #{tpu_custom_call.1} parent=35 // pred_check
              _
            $region38: #{tpu_custom_call.1} parent=35 // pred_check_branch
              %197 = sbr.rel (0) target = $region40
            $region39: #{tpu_custom_call.1} parent=35 // pred_region
              // Predicated region
              $region52: #{tpu_custom_call.1} parent=39 // pred_check
                _
              $region53: #{tpu_custom_call.1} parent=39 // pred_check_branch
                %215 = sbr.rel (0) target = $region55
              $region54: #{tpu_custom_call.1} parent=39 // pred_region
                loop: start=0, step=1, limit=1
                $region56: #{tpu_custom_call.1} parent=54 // loop_pre_header
                  _
                $region57: #{tpu_custom_call.1} parent=54 // loop_header
                  %s217 = sphi 0, %s221
                  %p218 = scmp.ge.s32.totalorder %s217, 1
                  %s222 = sphi %s193, %s193
                  %s223 = sphi %s189, %s189
                $region58: #{tpu_custom_call.1} parent=54 // loop_header_branch
                  %220 = sbr.rel (%p218) target = $region62
                $region59: #{tpu_custom_call.1} parent=54 // loop_body
                  %v224 = vld [vmem:[%s222] sm:$0xff]
                  %225 = vst [vmem:[%s223] sm:$0xff] %v224
                  %v226 = vld [vmem:[%s222 + $0x10] sm:$0xff]
                  %227 = vst [vmem:[%s223 + $0x8] sm:$0xff] %v226
                $region60: #{tpu_custom_call.1} parent=54 // loop_footer
                  %s221 = sadd.s32 1, %s217
                $region61: #{tpu_custom_call.1} parent=54 // loop_footer_branch
                  %216 = sbr.rel target = $region57
                $region62: #{tpu_custom_call.1} parent=54 // loop_exit
                  _
              $region55: #{tpu_custom_call.1} parent=39 // pred_fallthru
                _
              // Predicated region
              $region63: #{tpu_custom_call.1} parent=39 // pred_check
                _
              $region64: #{tpu_custom_call.1} parent=39 // pred_check_branch
                %229 = sbr.rel target = $region66
              $region65: #{tpu_custom_call.1} parent=39 // pred_region
                _
              $region66: #{tpu_custom_call.1} parent=39 // pred_fallthru
                _
            $region40: #{tpu_custom_call.1} parent=35 // pred_fallthru
              _
            // Predicated region
            $region41: #{tpu_custom_call.1} parent=35 // pred_check
              _
            $region42: #{tpu_custom_call.1} parent=35 // pred_check_branch
              %199 = sbr.rel target = $region44
            $region43: #{tpu_custom_call.1} parent=35 // pred_region
              %s201 = ssub.s32 256, 1
              loop: start=0, step=1, limit=1
              $region45: #{tpu_custom_call.1} parent=43 // loop_pre_header
                _
              $region46: #{tpu_custom_call.1} parent=43 // loop_header
                %s203 = sphi 0, %s207
                %p204 = scmp.ge.s32.totalorder %s203, 1
                %s208 = sphi %s193, %s193
                %s209 = sphi %s189, %s189
              $region47: #{tpu_custom_call.1} parent=43 // loop_header_branch
                %206 = sbr.rel (%p204) target = $region51
              $region48: #{tpu_custom_call.1} parent=43 // loop_body
                %v210 = vld [vmem:[%s208] sm:%s201]
                %211 = vst [vmem:[%s209] sm:%s201] %v210
                %v212 = vld [vmem:[%s208 + $0x10] sm:%s201]
                %213 = vst [vmem:[%s209 + $0x8] sm:%s201] %v212
              $region49: #{tpu_custom_call.1} parent=43 // loop_footer
                %s207 = sadd.s32 1, %s203
              $region50: #{tpu_custom_call.1} parent=43 // loop_footer_branch
                %202 = sbr.rel target = $region46
              $region51: #{tpu_custom_call.1} parent=43 // loop_exit
                _
            $region44: #{tpu_custom_call.1} parent=35 // pred_fallthru
              _
          $region36: #{tpu_custom_call.1} parent=31 // pred_fallthru
            _
          %230 = vnop
        $region32: #{tpu_custom_call.1} parent=27 // pred_fallthru
          _
        // Predicated region
        $region67: #{tpu_custom_call.1} parent=27 // pred_check
          %p231 = pneg %p60
        $region68: #{tpu_custom_call.1} parent=27 // pred_check_branch
          %233 = sbr.rel (%p231) target = $region70
        $region69: #{tpu_custom_call.1} parent=27 // pred_region
          %s234 = sand.u32 %s50, 1
          %s235 = sand.u32 %s50, 1
          %s236 = smul.addr %s235, 16
          %s237 = scalar_lea.vmem [#allocation3], %s236
          %s238 = smul.u32 2, %s14
          %s239 = smul.addr %s238, 2
          %s240 = sadd.s32 1, %s239
          %s241 = smul.addr %s240, 8
          %s242 = scalar_lea.vmem %s1, %s241
          // Predicated region
          $region71: #{tpu_custom_call.1} parent=69 // pred_check
            _
          $region72: #{tpu_custom_call.1} parent=69 // pred_check_branch
            %244 = sbr.rel (0) target = $region74
          $region73: #{tpu_custom_call.1} parent=69 // pred_region
            // Predicated region
            $region75: #{tpu_custom_call.1} parent=73 // pred_check
              _
            $region76: #{tpu_custom_call.1} parent=73 // pred_check_branch
              %246 = sbr.rel (0) target = $region78
            $region77: #{tpu_custom_call.1} parent=73 // pred_region
              // Predicated region
              $region90: #{tpu_custom_call.1} parent=77 // pred_check
                _
              $region91: #{tpu_custom_call.1} parent=77 // pred_check_branch
                %264 = sbr.rel (0) target = $region93
              $region92: #{tpu_custom_call.1} parent=77 // pred_region
                loop: start=0, step=1, limit=1
                $region94: #{tpu_custom_call.1} parent=92 // loop_pre_header
                  _
                $region95: #{tpu_custom_call.1} parent=92 // loop_header
                  %s266 = sphi 0, %s270
                  %p267 = scmp.ge.s32.totalorder %s266, 1
                  %s271 = sphi %s242, %s242
                  %s272 = sphi %s237, %s237
                $region96: #{tpu_custom_call.1} parent=92 // loop_header_branch
                  %269 = sbr.rel (%p267) target = $region100
                $region97: #{tpu_custom_call.1} parent=92 // loop_body
                  %v273 = vld [vmem:[%s271] sm:$0xff]
                  %274 = vst [vmem:[%s272] sm:$0xff] %v273
                  %v275 = vld [vmem:[%s271 + $0x10] sm:$0xff]
                  %276 = vst [vmem:[%s272 + $0x8] sm:$0xff] %v275
                $region98: #{tpu_custom_call.1} parent=92 // loop_footer
                  %s270 = sadd.s32 1, %s266
                $region99: #{tpu_custom_call.1} parent=92 // loop_footer_branch
                  %265 = sbr.rel target = $region95
                $region100: #{tpu_custom_call.1} parent=92 // loop_exit
                  _
              $region93: #{tpu_custom_call.1} parent=77 // pred_fallthru
                _
              // Predicated region
              $region101: #{tpu_custom_call.1} parent=77 // pred_check
                _
              $region102: #{tpu_custom_call.1} parent=77 // pred_check_branch
                %278 = sbr.rel target = $region104
              $region103: #{tpu_custom_call.1} parent=77 // pred_region
                _
              $region104: #{tpu_custom_call.1} parent=77 // pred_fallthru
                _
            $region78: #{tpu_custom_call.1} parent=73 // pred_fallthru
              _
            // Predicated region
            $region79: #{tpu_custom_call.1} parent=73 // pred_check
              _
            $region80: #{tpu_custom_call.1} parent=73 // pred_check_branch
              %248 = sbr.rel target = $region82
            $region81: #{tpu_custom_call.1} parent=73 // pred_region
              %s250 = ssub.s32 256, 1
              loop: start=0, step=1, limit=1
              $region83: #{tpu_custom_call.1} parent=81 // loop_pre_header
                _
              $region84: #{tpu_custom_call.1} parent=81 // loop_header
                %s252 = sphi 0, %s256
                %p253 = scmp.ge.s32.totalorder %s252, 1
                %s257 = sphi %s242, %s242
                %s258 = sphi %s237, %s237
              $region85: #{tpu_custom_call.1} parent=81 // loop_header_branch
                %255 = sbr.rel (%p253) target = $region89
              $region86: #{tpu_custom_call.1} parent=81 // loop_body
                %v259 = vld [vmem:[%s257] sm:%s250]
                %260 = vst [vmem:[%s258] sm:%s250] %v259
                %v261 = vld [vmem:[%s257 + $0x10] sm:%s250]
                %262 = vst [vmem:[%s258 + $0x8] sm:%s250] %v261
              $region87: #{tpu_custom_call.1} parent=81 // loop_footer
                %s256 = sadd.s32 1, %s252
              $region88: #{tpu_custom_call.1} parent=81 // loop_footer_branch
                %251 = sbr.rel target = $region84
              $region89: #{tpu_custom_call.1} parent=81 // loop_exit
                _
            $region82: #{tpu_custom_call.1} parent=73 // pred_fallthru
              _
          $region74: #{tpu_custom_call.1} parent=69 // pred_fallthru
            _
          %279 = vnop
        $region70: #{tpu_custom_call.1} parent=27 // pred_fallthru
          _
      $region28: #{tpu_custom_call.1} parent=5 // pred_fallthru
        _
      %p280 = scmp.le.s32.totalorder 1, %s14
      %p281 = scmp.lt.s32.totalorder %s14, 9
      %p282 = pnand %p280, %p281
      %p283 = pneg %p282
      // Predicated region
      $region105: #{tpu_custom_call.1} parent=5 // pred_check
        _
      $region106: #{tpu_custom_call.1} parent=5 // pred_check_branch
        %285 = sbr.rel (%p282) target = $region108
      $region107: #{tpu_custom_call.1} parent=5 // pred_region
        %s286 = ssub.s32 %s14, 1
        %s287 = sand.u32 %s27, 1
        %s288 = sand.u32 %s27, 1
        %s289 = smul.addr %s288, 16
        %s290 = scalar_lea.vmem [#allocation2], %s289
        // Predicated region
        $region109: #{tpu_custom_call.1} parent=107 // pred_check
          %p291 = pneg %p40
        $region110: #{tpu_custom_call.1} parent=107 // pred_check_branch
          %293 = sbr.rel (%p291) target = $region112
        $region111: #{tpu_custom_call.1} parent=107 // pred_region
          _
        $region112: #{tpu_custom_call.1} parent=107 // pred_fallthru
          _
        %s294 = sand.u32 %s53, 1
        %s295 = sand.u32 %s53, 1
        %s296 = smul.addr %s295, 16
        %s297 = scalar_lea.vmem [#allocation3], %s296
        // Predicated region
        $region113: #{tpu_custom_call.1} parent=107 // pred_check
          %p298 = pneg %p66
        $region114: #{tpu_custom_call.1} parent=107 // pred_check_branch
          %300 = sbr.rel (%p298) target = $region116
        $region115: #{tpu_custom_call.1} parent=107 // pred_region
          _
        $region116: #{tpu_custom_call.1} parent=107 // pred_fallthru
          _
        %s301 = sand.u32 %s27, 1
        %s302 = sand.u32 %s27, 1
        %s303 = smul.addr %s302, 16
        %s304 = scalar_lea.vmem [#allocation2], %s303
        %p305 = pneg %p40
        %p306 = pneg %p37
        %s307 = sand.u32 %s53, 1
        %s308 = sand.u32 %s53, 1
        %s309 = smul.addr %s308, 16
        %s310 = scalar_lea.vmem [#allocation3], %s309
        %p311 = pneg %p66
        %p312 = pneg %p63
        %p313 = pneg %p87
        %p314 = pneg %p84
        %p315 = pneg %p108
        %p316 = pneg %p105
        %p317 = pneg %p129
        %p318 = pneg %p126
        %p319 = pneg %p155
        %p320 = pneg %p152
        %s321 = sand.u32 %s142, 1
        %s322 = scalar_lea.sflag [#allocation5], %s321
        %s323 = sand.u32 %s142, 1
        %s324 = smul.addr %s323, 16
        %s325 = scalar_lea.vmem [#allocation4], %s324
        %s326 = smul.u32 2, %s19
        %s327 = smul.u32 2, %s19
        %s328 = smul.u32 2, %s19
        %v330 = vld [vmem:[%s290] sm:$0xff]
        %v331 = vld [vmem:[%s290 + $0x8] sm:$0xff]
        %v332 = vpack.c.bf16 %v331, %v330
        %v333 = vld [vmem:[%s297] sm:$0xff]
        %v334 = vld [vmem:[%s297 + $0x8] sm:$0xff]
        %v335 = vpack.c.bf16 %v334, %v333
        %v336 = vld [vmem:[%s2] sm:$0xf]
        %v337 = vld [vmem:[%s3] sm:$0xf]
        %vm338 = vcmask 64512
        %v340 = vsel %vm338, %v335, 0
        %vm342 = vcmask 1043456
        %v344 = vsel %vm342, %v337, 0
        %346 = vmatpush.bf16.msra.mxu0 0
        %347 = vmatpush.bf16.msra.mxu0 0
        %348 = vmatpush.bf16.msra.mxu0 0
        %349 = vmatpush.bf16.msra.mxu0 0
        %350 = vmatpush.bf16.msra.mxu0 0
        %351 = vmatpush.bf16.msra.mxu0 0
        %352 = vmatpush.bf16.msra.mxu0 0
        %353 = vmatpush.bf16.msra.mxu0 %v344
        %354 = vmatmul.bf16.gmra.mxu0 %v340
        %v355 = vpop.f32.mrf.mxu0
        %v356 = vadd.f32 0.0, %v355
        %v357 = vpop.f32.mrf.mxu0
        %v358 = vadd.f32 0.0, %v357
        %359 = vdwg.mxu0
        %v361 = vsel %vm338, %v332, 0
        %v364 = vsel %vm342, %v336, 0
        %366 = vmatpush.bf16.msra.mxu0 0
        %367 = vmatpush.bf16.msra.mxu0 0
        %368 = vmatpush.bf16.msra.mxu0 0
        %369 = vmatpush.bf16.msra.mxu0 0
        %370 = vmatpush.bf16.msra.mxu0 0
        %371 = vmatpush.bf16.msra.mxu0 0
        %372 = vmatpush.bf16.msra.mxu0 0
        %373 = vmatpush.bf16.msra.mxu0 %v364
        %374 = vmatmul.bf16.gmra.mxu0 %v361
        %v375 = vpop.f32.mrf.mxu0
        %v376 = vadd.f32 %v356, %v375
        %v377 = vpop.f32.mrf.mxu0
        %v378 = vadd.f32 %v358, %v377
        %379 = vdwg.mxu0
        %v380 = vld [vmem:[%s4] sm:$0x1]
        %v382 = vperm.slane %v380, 0
        %v384 = vadd.f32 %v376, %v382
        %v385 = vadd.f32 %v378, %v382
        %386 = vst [vmem:[%s325] sm:$0xff] %v384
        %387 = vst [vmem:[%s325 + $0x8] sm:$0xff] %v385
        %s388 = sand.u32 %s142, 1
        %s389 = scalar_lea.sflag [#allocation5], %s388
        %s390 = sand.u32 %s142, 1
        %s391 = smul.addr %s390, 16
        %s392 = scalar_lea.vmem [#allocation4], %s391
        // Predicated region
        $region117: #{tpu_custom_call.1} parent=107 // pred_check
          %p393 = pneg %p152
        $region118: #{tpu_custom_call.1} parent=107 // pred_check_branch
          %395 = sbr.rel (%p393) target = $region120
        $region119: #{tpu_custom_call.1} parent=107 // pred_region
          %s396 = smul.u32 2, %s19
          %398 = vsyncadd %s389, 0
          %s399 = smul.addr %s396, 8
          %s400 = scalar_lea.hbm %s5, %s399
          %s401 = sshll.u32 %s392, 4
          %s402 = int_to_ptr.vmem [resolvable:$true] %s401
          %s403 = sshll.u32 %s400, 4
          %s404 = int_to_ptr.hbm [resolvable:$true] %s403
          %409 = dma.vmem_to_hbm [thread:$0]  %s402, 256, %s404, %s389, 128, 128, 8
        $region120: #{tpu_custom_call.1} parent=107 // pred_fallthru
          _
      $region108: #{tpu_custom_call.1} parent=5 // pred_fallthru
        _
      %p410 = scmp.le.s32.totalorder 2, %s14
      // Predicated region
      $region121: #{tpu_custom_call.1} parent=5 // pred_check
        %p411 = pneg %p410
      $region122: #{tpu_custom_call.1} parent=5 // pred_check_branch
        %413 = sbr.rel (%p411) target = $region124
      $region123: #{tpu_custom_call.1} parent=5 // pred_region
        %s414 = ssub.s32 %s14, 2
        // Predicated region
        $region125: #{tpu_custom_call.1} parent=123 // pred_check
          %p415 = pneg %p158
        $region126: #{tpu_custom_call.1} parent=123 // pred_check_branch
          %417 = sbr.rel (%p415) target = $region128
        $region127: #{tpu_custom_call.1} parent=123 // pred_region
          %s418 = sand.u32 %s143, 1
          %s419 = scalar_lea.sflag [#allocation5], %s418
          %s420 = sand.u32 %s143, 1
          %s421 = smul.addr %s420, 16
          %s422 = scalar_lea.vmem [#allocation4], %s421
          %424 = dma.done %s419, 256
        $region128: #{tpu_custom_call.1} parent=123 // pred_fallthru
          _
      $region124: #{tpu_custom_call.1} parent=5 // pred_fallthru
        _
    $region6: #{tpu_custom_call.1} parent=1 // loop_footer
      %s18 = sadd.s32 1, %s14
    $region7: #{tpu_custom_call.1} parent=1 // loop_footer_branch
      %13 = sbr.rel target = $region3
    $region8: #{tpu_custom_call.1} parent=1 // loop_exit
      _
    %425 = vsyncpa [#allocation5], 1
    %s426 = scalar_lea.sflag [#allocation5], 1
    %427 = vsyncpa %s426, 1

</llo_original>
